<compile_context>
chip_gen: v7x
topology: tpu7x:2x2x1
jax: 0.10.0
libtpu: 0.0.40
codegen_flags: <defaults>
</compile_context>

<pallas_src>
import functools

import jax
import jax.numpy as jnp
from jax.experimental import pallas as pl
from jax.experimental.pallas import tpu as pltpu

EPS = 1e-5


# --------------------------------------------------------------------------
# Fused kernel: conv matmul + BN stats (phase 0) / conv matmul + BN + ReLU (phase 1)
# --------------------------------------------------------------------------
def fused_conv_bn_relu_kernel(w_ref, p_ref, g_ref, b_ref, o_ref,
                              sum_ref, sq_ref, scale_ref, shift_ref, *, inv_count):
    # w_ref: (tile_c, ck) bf16   p_ref: (ck, tm) bf16
    # g_ref/b_ref: (tile_c, 1) f32   o_ref: (tile_c, tm) f32
    # scratch: sum/sq/scale/shift (tile_c, 1) f32, resident across the grid.
    phase = pl.program_id(1)
    j = pl.program_id(2)

    @pl.when((phase == 0) & (j == 0))
    def _init():
        sum_ref[...] = jnp.zeros_like(sum_ref)
        sq_ref[...] = jnp.zeros_like(sq_ref)

    # im2col conv as a single MXU matmul; f32 accumulation.
    y = jnp.dot(w_ref[...], p_ref[...], preferred_element_type=jnp.float32)

    @pl.when(phase == 0)
    def _stats():
        # Padded lane columns are exact zeros (zero patches, no bias), so they
        # contribute nothing to either statistic.
        sum_ref[...] += jnp.sum(y, axis=1, keepdims=True)
        sq_ref[...] += jnp.sum(y * y, axis=1, keepdims=True)

    @pl.when((phase == 1) & (j == 0))
    def _finalize():
        mean = sum_ref[...] * inv_count
        var = jnp.maximum(sq_ref[...] * inv_count - mean * mean, 0.0)
        scale = g_ref[...] * jax.lax.rsqrt(var + EPS)
        scale_ref[...] = scale
        shift_ref[...] = b_ref[...] - mean * scale

    @pl.when(phase == 1)
    def _emit():
        o_ref[...] = jnp.maximum(y * scale_ref[...] + shift_ref[...], 0.0)


# --------------------------------------------------------------------------
# Wrapper
# --------------------------------------------------------------------------
def _round_up(a, b):
    return (a + b - 1) // b * b


def _pick_channel_tile(c_out_8):
    # Prefer >= 2 channel tiles so v7x's second TensorCore has work on the
    # "parallel" axis; cap at 128 rows, floor at 8 (sublane).
    if c_out_8 >= 256:
        return 128
    if c_out_8 >= 16 and c_out_8 % 16 == 0:
        return c_out_8 // 2
    return c_out_8


def conv_bn_relu(x, weight, bias, gamma, beta):
    """x: (N, C_in, L) f32; weight: (C_out, C_in, K) f32 (PyTorch Conv1d layout)."""
    del bias  # cancelled exactly by training-mode BN mean subtraction (see header)
    n, c_in, length = x.shape
    c_out, _, ktaps = weight.shape
    l_out = length - ktaps + 1
    ck = c_in * ktaps
    m_raw = n * l_out

    # ---- tiling ----
    c_out_8 = _round_up(c_out, 8)
    tile_c = _pick_channel_tile(c_out_8)
    c_out_p = _round_up(c_out_8, tile_c)
    tm = min(_round_up(m_raw, 128), 2048)     # lane tile (multiple of 128)
    m_pad = _round_up(m_raw, tm)              # single global pad of the lane axis
    grid = (c_out_p // tile_c, 2, m_pad // tm)

    # ---- im2col (pure slicing/stack; the only transpose is of x itself) ----
    # TODO(synk): build the patch tile in-kernel (halo'd x tiles) to cut the
    # K-fold activation read; wrapper-side im2col kept for simplicity.
    x_t = jnp.transpose(x, (1, 0, 2)).astype(jnp.bfloat16)            # (C_in, N, L)
    cols = [x_t[:, :, k:k + l_out] for k in range(ktaps)]             # K x (C_in, N, L_out)
    p_mat = jnp.stack(cols, axis=1).reshape(ck, m_raw)                # (C_in*K, N*L_out)
    p_mat = jnp.pad(p_mat, ((0, 0), (0, m_pad - m_raw)))              # (ck, m_pad)

    w2 = weight.reshape(c_out, ck).astype(jnp.bfloat16)
    w2 = jnp.pad(w2, ((0, c_out_p - c_out), (0, 0)))                  # (c_out_p, ck)

    g_col = jnp.pad(gamma.astype(jnp.float32), (0, c_out_p - c_out)).reshape(c_out_p, 1)
    b_col = jnp.pad(beta.astype(jnp.float32), (0, c_out_p - c_out)).reshape(c_out_p, 1)

    inv_count = 1.0 / float(m_raw)            # biased variance over (N, L_out)

    out_flat = pl.pallas_call(
        functools.partial(fused_conv_bn_relu_kernel, inv_count=inv_count),
        grid=grid,
        in_specs=[
            pl.BlockSpec((tile_c, ck), lambda i, p, j: (i, 0)),   # weights: resident per i
            pl.BlockSpec((ck, tm), lambda i, p, j: (0, j)),       # patches: re-read in phase 1
            pl.BlockSpec((tile_c, 1), lambda i, p, j: (i, 0)),    # gamma
            pl.BlockSpec((tile_c, 1), lambda i, p, j: (i, 0)),    # beta
        ],
        # phase 0 parks the output index at (i, 0) -> no garbage write-backs;
        # every output tile is written exactly once with phase-1 content.
        out_specs=pl.BlockSpec((tile_c, tm), lambda i, p, j: (i, j * p)),
        out_shape=jax.ShapeDtypeStruct((c_out_p, m_pad), jnp.float32),
        scratch_shapes=[
            pltpu.VMEM((tile_c, 1), jnp.float32),   # per-channel sum
            pltpu.VMEM((tile_c, 1), jnp.float32),   # per-channel sum of squares
            pltpu.VMEM((tile_c, 1), jnp.float32),   # BN scale
            pltpu.VMEM((tile_c, 1), jnp.float32),   # BN shift
        ],
        compiler_params=pltpu.CompilerParams(
            dimension_semantics=("parallel", "arbitrary", "arbitrary"),
            vmem_limit_bytes=48 * 1024 * 1024,      # fits v7x's 64 MiB physical VMEM
        ),
    )(w2, p_mat, g_col, b_col)

    # ---- back to PyTorch NCW layout, drop channel / lane padding ----
    # TODO(synk): emit NCW directly from the kernel (needs per-sample lane tiles);
    # kept as one small XLA transpose for now.
    out = out_flat[:c_out, :m_raw].reshape(c_out, n, l_out)
    return jnp.transpose(out, (1, 0, 2))


# --------------------------------------------------------------------------
# Pure-JAX reference: F.relu(bn(conv1d(x))) with BN batch statistics.
# Conv inputs are bf16-cast to mirror the kernel's MXU input precision.
# --------------------------------------------------------------------------
def reference(x, weight, bias, gamma, beta):
    y = jax.lax.conv_general_dilated(
        x.astype(jnp.bfloat16).astype(jnp.float32),
        weight.astype(jnp.bfloat16).astype(jnp.float32),
        window_strides=(1,), padding="VALID",
        dimension_numbers=("NCH", "OIH", "NCH"))
    y = y + bias[None, :, None]          # bias kept here; cancelled by BN below
    mean = jnp.mean(y, axis=(0, 2), keepdims=True)
    var = jnp.mean((y - mean) ** 2, axis=(0, 2), keepdims=True)
    out = (y - mean) / jnp.sqrt(var + EPS) * gamma[None, :, None] + beta[None, :, None]
    return jnp.maximum(out, 0.0)


if __name__ == "__main__":
    N, C_IN, C_OUT, L, K = 2, 4, 8, 16, 3

    key = jax.random.PRNGKey(0)
    kx, kw, kb = jax.random.split(key, 3)

    x = jax.random.normal(kx, (N, C_IN, L), dtype=jnp.float32)
    # Deterministic Conv1d params (kaiming-uniform-like bound, purely synthetic).
    bound = 1.0 / (C_IN * K) ** 0.5
    weight = jax.random.uniform(kw, (C_OUT, C_IN, K), jnp.float32, -bound, bound)
    bias = jax.random.uniform(kb, (C_OUT,), jnp.float32, -bound, bound)
    # BatchNorm1d default init: gamma = 1, beta = 0.
    gamma = jnp.ones((C_OUT,), jnp.float32)
    beta = jnp.zeros((C_OUT,), jnp.float32)

    out = jax.block_until_ready(conv_bn_relu(x, weight, bias, gamma, beta))
    ref = reference(x, weight, bias, gamma, beta)

    assert out.shape == (N, C_OUT, L - K + 1), out.shape
    assert jnp.allclose(out, ref, rtol=5e-3, atol=5e-3), "mismatch vs reference"

    # TODO(synk): eval-mode BatchNorm (running_mean/var + conv bias) path not
    # implemented; this kernel implements the module's default training-mode forward.
    print("KERNEL_OK")
</pallas_src>

<mosaic_0001>
module attributes {stable_mosaic.version = 11 : i64} {
  func.func @fused_conv_bn_relu_kernel(%arg0: i32, %arg1: i32, %arg2: i32, %arg3: memref<8x12xbf16, #tpu.memory_space<vmem>>, %arg4: memref<12x128xbf16, #tpu.memory_space<vmem>>, %arg5: memref<8x1xf32, #tpu.memory_space<vmem>>, %arg6: memref<8x1xf32, #tpu.memory_space<vmem>>, %arg7: memref<8x128xf32, #tpu.memory_space<vmem>>, %arg8: memref<8x1xf32, #tpu.memory_space<vmem>>, %arg9: memref<8x1xf32, #tpu.memory_space<vmem>>, %arg10: memref<8x1xf32, #tpu.memory_space<vmem>>, %arg11: memref<8x1xf32, #tpu.memory_space<vmem>>) attributes {dimension_semantics = [#tpu.dimension_semantics<parallel>, #tpu.dimension_semantics<arbitrary>, #tpu.dimension_semantics<arbitrary>], iteration_bounds = array<i64: 1, 2, 1>, scalar_prefetch = 0 : i64, scratch_operands = 4 : i64, tpu.core_type = #tpu.core_type<tc>, window_params = [{transform_indices = @transform_0, window_bounds = array<i64: 8, 12>}, {transform_indices = @transform_1, window_bounds = array<i64: 12, 128>}, {transform_indices = @transform_2, window_bounds = array<i64: 8, 1>}, {transform_indices = @transform_3, window_bounds = array<i64: 8, 1>}, {transform_indices = @transform_4, window_bounds = array<i64: 8, 128>}]} {
    %c0_i32 = arith.constant 0 : i32
    %0 = arith.cmpi eq, %arg1, %c0_i32 : i32
    %c0_i32_0 = arith.constant 0 : i32
    %1 = arith.cmpi eq, %arg2, %c0_i32_0 : i32
    %2 = arith.andi %0, %1 : i1
    %3 = arith.extui %2 : i1 to i32
    %c0_i32_1 = arith.constant 0 : i32
    %4 = arith.cmpi ne, %3, %c0_i32_1 : i32
    scf.if %4 {
      %cst_11 = arith.constant 0.000000e+00 : f32
      %19 = vector.broadcast %cst_11 : f32 to vector<8x1xf32>
      %c0_12 = arith.constant 0 : index
      %c0_13 = arith.constant 0 : index
      %20 = vector.load %arg8[%c0_12, %c0_13] : memref<8x1xf32, #tpu.memory_space<vmem>>, vector<8x1xf32>
      tpu.vector_store %arg8[%c0_12, %c0_13], %19 {strides = array<i32>} : memref<8x1xf32, #tpu.memory_space<vmem>>, vector<8x1xf32>,
      %cst_14 = arith.constant 0.000000e+00 : f32
      %21 = vector.broadcast %cst_14 : f32 to vector<8x1xf32>
      %c0_15 = arith.constant 0 : index
      %c0_16 = arith.constant 0 : index
      %22 = vector.load %arg9[%c0_15, %c0_16] : memref<8x1xf32, #tpu.memory_space<vmem>>, vector<8x1xf32>
      tpu.vector_store %arg9[%c0_15, %c0_16], %21 {strides = array<i32>} : memref<8x1xf32, #tpu.memory_space<vmem>>, vector<8x1xf32>,
    } else {
    }
    %c0 = arith.constant 0 : index
    %c0_2 = arith.constant 0 : index
    %5 = vector.load %arg3[%c0, %c0_2] : memref<8x12xbf16, #tpu.memory_space<vmem>>, vector<8x12xbf16>
    %c0_3 = arith.constant 0 : index
    %c0_4 = arith.constant 0 : index
    %6 = vector.load %arg4[%c0_3, %c0_4] : memref<12x128xbf16, #tpu.memory_space<vmem>>, vector<12x128xbf16>
    %cst = arith.constant dense<0.000000e+00> : vector<8x128xf32>
    %7 = tpu.matmul %5, %6, %cst {dimension_numbers = #tpu.dot_dimension_numbers<[1], [0], [0], [1], [0, 0, 1, 1], [], []>} : vector<8x12xbf16>, vector<12x128xbf16>, vector<8x128xf32> -> vector<8x128xf32>
    %c0_i32_5 = arith.constant 0 : i32
    %8 = arith.cmpi eq, %arg1, %c0_i32_5 : i32
    %9 = arith.extui %8 : i1 to i32
    %c0_i32_6 = arith.constant 0 : i32
    %10 = arith.cmpi ne, %9, %c0_i32_6 : i32
    scf.if %10 {
      %c0_11 = arith.constant 0 : index
      %c0_12 = arith.constant 0 : index
      %19 = vector.load %arg8[%c0_11, %c0_12] : memref<8x1xf32, #tpu.memory_space<vmem>>, vector<8x1xf32>
      %cst_13 = arith.constant dense<0.000000e+00> : vector<8xf32>
      %20 = vector.multi_reduction <add>, %7, %cst_13 [1] : vector<8x128xf32> to vector<8xf32>
      %21 = vector.shape_cast %20 : vector<8xf32> to vector<8x1xf32>
      %22 = arith.addf %19, %21 : vector<8x1xf32>
      %c0_14 = arith.constant 0 : index
      %c0_15 = arith.constant 0 : index
      %23 = vector.load %arg8[%c0_14, %c0_15] : memref<8x1xf32, #tpu.memory_space<vmem>>, vector<8x1xf32>
      tpu.vector_store %arg8[%c0_14, %c0_15], %22 {strides = array<i32>} : memref<8x1xf32, #tpu.memory_space<vmem>>, vector<8x1xf32>,
      %c0_16 = arith.constant 0 : index
      %c0_17 = arith.constant 0 : index
      %24 = vector.load %arg9[%c0_16, %c0_17] : memref<8x1xf32, #tpu.memory_space<vmem>>, vector<8x1xf32>
      %25 = arith.mulf %7, %7 : vector<8x128xf32>
      %cst_18 = arith.constant dense<0.000000e+00> : vector<8xf32>
      %26 = vector.multi_reduction <add>, %25, %cst_18 [1] : vector<8x128xf32> to vector<8xf32>
      %27 = vector.shape_cast %26 : vector<8xf32> to vector<8x1xf32>
      %28 = arith.addf %24, %27 : vector<8x1xf32>
      %c0_19 = arith.constant 0 : index
      %c0_20 = arith.constant 0 : index
      %29 = vector.load %arg9[%c0_19, %c0_20] : memref<8x1xf32, #tpu.memory_space<vmem>>, vector<8x1xf32>
      tpu.vector_store %arg9[%c0_19, %c0_20], %28 {strides = array<i32>} : memref<8x1xf32, #tpu.memory_space<vmem>>, vector<8x1xf32>,
    } else {
    }
    %c1_i32 = arith.constant 1 : i32
    %11 = arith.cmpi eq, %arg1, %c1_i32 : i32
    %c0_i32_7 = arith.constant 0 : i32
    %12 = arith.cmpi eq, %arg2, %c0_i32_7 : i32
    %13 = arith.andi %11, %12 : i1
    %14 = arith.extui %13 : i1 to i32
    %c0_i32_8 = arith.constant 0 : i32
    %15 = arith.cmpi ne, %14, %c0_i32_8 : i32
    scf.if %15 {
      %c0_11 = arith.constant 0 : index
      %c0_12 = arith.constant 0 : index
      %19 = vector.load %arg8[%c0_11, %c0_12] : memref<8x1xf32, #tpu.memory_space<vmem>>, vector<8x1xf32>
      %cst_13 = arith.constant 0.0357142873 : f32
      %20 = vector.broadcast %cst_13 : f32 to vector<8x1xf32>
      %21 = arith.mulf %19, %20 : vector<8x1xf32>
      %c0_14 = arith.constant 0 : index
      %c0_15 = arith.constant 0 : index
      %22 = vector.load %arg9[%c0_14, %c0_15] : memref<8x1xf32, #tpu.memory_space<vmem>>, vector<8x1xf32>
      %cst_16 = arith.constant 0.0357142873 : f32
      %23 = vector.broadcast %cst_16 : f32 to vector<8x1xf32>
      %24 = arith.mulf %22, %23 : vector<8x1xf32>
      %25 = arith.mulf %21, %21 : vector<8x1xf32>
      %26 = arith.subf %24, %25 : vector<8x1xf32>
      %cst_17 = arith.constant 0.000000e+00 : f32
      %27 = vector.broadcast %cst_17 : f32 to vector<8x1xf32>
      %28 = arith.maximumf %26, %27 : vector<8x1xf32>
      %c0_18 = arith.constant 0 : index
      %c0_19 = arith.constant 0 : index
      %29 = vector.load %arg5[%c0_18, %c0_19] : memref<8x1xf32, #tpu.memory_space<vmem>>, vector<8x1xf32>
      %cst_20 = arith.constant 9.99999974E-6 : f32
      %30 = vector.broadcast %cst_20 : f32 to vector<8x1xf32>
      %31 = arith.addf %28, %30 : vector<8x1xf32>
      %32 = math.rsqrt %31 : vector<8x1xf32>
      %33 = arith.mulf %29, %32 : vector<8x1xf32>
      %c0_21 = arith.constant 0 : index
      %c0_22 = arith.constant 0 : index
      %34 = vector.load %arg10[%c0_21, %c0_22] : memref<8x1xf32, #tpu.memory_space<vmem>>, vector<8x1xf32>
      tpu.vector_store %arg10[%c0_21, %c0_22], %33 {strides = array<i32>} : memref<8x1xf32, #tpu.memory_space<vmem>>, vector<8x1xf32>,
      %c0_23 = arith.constant 0 : index
      %c0_24 = arith.constant 0 : index
      %35 = vector.load %arg6[%c0_23, %c0_24] : memref<8x1xf32, #tpu.memory_space<vmem>>, vector<8x1xf32>
      %36 = arith.mulf %21, %33 : vector<8x1xf32>
      %37 = arith.subf %35, %36 : vector<8x1xf32>
      %c0_25 = arith.constant 0 : index
      %c0_26 = arith.constant 0 : index
      %38 = vector.load %arg11[%c0_25, %c0_26] : memref<8x1xf32, #tpu.memory_space<vmem>>, vector<8x1xf32>
      tpu.vector_store %arg11[%c0_25, %c0_26], %37 {strides = array<i32>} : memref<8x1xf32, #tpu.memory_space<vmem>>, vector<8x1xf32>,
    } else {
    }
    %c1_i32_9 = arith.constant 1 : i32
    %16 = arith.cmpi eq, %arg1, %c1_i32_9 : i32
    %17 = arith.extui %16 : i1 to i32
    %c0_i32_10 = arith.constant 0 : i32
    %18 = arith.cmpi ne, %17, %c0_i32_10 : i32
    scf.if %18 {
      %c0_11 = arith.constant 0 : index
      %c0_12 = arith.constant 0 : index
      %19 = vector.load %arg10[%c0_11, %c0_12] : memref<8x1xf32, #tpu.memory_space<vmem>>, vector<8x1xf32>
      %20 = vector.broadcast %19 : vector<8x1xf32> to vector<8x128xf32>
      %21 = arith.mulf %7, %20 : vector<8x128xf32>
      %c0_13 = arith.constant 0 : index
      %c0_14 = arith.constant 0 : index
      %22 = vector.load %arg11[%c0_13, %c0_14] : memref<8x1xf32, #tpu.memory_space<vmem>>, vector<8x1xf32>
      %23 = vector.broadcast %22 : vector<8x1xf32> to vector<8x128xf32>
      %24 = arith.addf %21, %23 : vector<8x128xf32>
      %cst_15 = arith.constant 0.000000e+00 : f32
      %25 = vector.broadcast %cst_15 : f32 to vector<8x128xf32>
      %26 = arith.maximumf %24, %25 : vector<8x128xf32>
      %c0_16 = arith.constant 0 : index
      %c0_17 = arith.constant 0 : index
      %27 = vector.load %arg7[%c0_16, %c0_17] : memref<8x128xf32, #tpu.memory_space<vmem>>, vector<8x128xf32>
      tpu.vector_store %arg7[%c0_16, %c0_17], %26 {strides = array<i32>} : memref<8x128xf32, #tpu.memory_space<vmem>>, vector<8x128xf32>,
    } else {
    }
    return
  }
  func.func @transform_0(%arg0: i32, %arg1: i32, %arg2: i32) -> (i32, i32) {
    %c0_i32 = arith.constant 0 : i32
    %c0_i32_0 = arith.constant 0 : i32
    return %arg0, %c0_i32 : i32, i32
  }
  func.func @transform_1(%arg0: i32, %arg1: i32, %arg2: i32) -> (i32, i32) {
    %c0_i32 = arith.constant 0 : i32
    %c0_i32_0 = arith.constant 0 : i32
    return %c0_i32, %arg2 : i32, i32
  }
  func.func @transform_2(%arg0: i32, %arg1: i32, %arg2: i32) -> (i32, i32) {
    %c0_i32 = arith.constant 0 : i32
    %c0_i32_0 = arith.constant 0 : i32
    return %arg0, %c0_i32 : i32, i32
  }
  func.func @transform_3(%arg0: i32, %arg1: i32, %arg2: i32) -> (i32, i32) {
    %c0_i32 = arith.constant 0 : i32
    %c0_i32_0 = arith.constant 0 : i32
    return %arg0, %c0_i32 : i32, i32
  }
  func.func @transform_4(%arg0: i32, %arg1: i32, %arg2: i32) -> (i32, i32) {
    %0 = arith.muli %arg2, %arg1 : i32
    %c0_i32 = arith.constant 0 : i32
    return %arg0, %0 : i32, i32
  }
}

</mosaic_0001>

<llo_original>
// kernel: tpu_custom_call.1
$region0: #{tpu_custom_call.1}
  #allocation0 [shape = 'u32[]', space=smem, size = 0x4, offset = 0x4, fixed_abs, tag = 'smem constant byte address 0x4 - core index']
  #allocation1 [shape = 'u32[144,128]{1,0:T(1,128)}', space=vmem, size = 0x12000, scoped, tag = 'internal scratch']
  #allocation2 [shape = 'f32[8,1]{1,0:T(8,128)}', space=vmem, size = 0x1000, scoped, tag = 'scratch operand']
  #allocation3 [shape = 'f32[8,1]{1,0:T(8,128)}', space=vmem, size = 0x1000, scoped, tag = 'scratch operand']
  #allocation4 [shape = 'f32[8,1]{1,0:T(8,128)}', space=vmem, size = 0x1000, scoped, tag = 'scratch operand']
  #allocation5 [shape = 'f32[8,1]{1,0:T(8,128)}', space=vmem, size = 0x1000, scoped, tag = 'scratch operand']
  %s0 = inlined_call_operand.vmem [shape: bf16[8,12], index: 0, kind: input, shape index: {}]
  %s1 = inlined_call_operand.vmem [shape: bf16[12,128], index: 1, kind: input, shape index: {}]
  %s2 = inlined_call_operand.vmem [shape: f32[8,1], index: 2, kind: input, shape index: {}]
  %s3 = inlined_call_operand.vmem [shape: f32[8,1], index: 3, kind: input, shape index: {}]
  %s4 = inlined_call_operand.hbm [shape: f32[8,128], index: 4, kind: output, shape index: {}]
  %s5 = sld [smem:[#allocation0]]
  $region65: #{tpu_custom_call.1} parent=0
    _
  %s7 = ssub.s32 1, %s5
  %s8 = scalar_select 0, %s7, %s5
  $region1: #{tpu_custom_call.1} parent=0
    #allocation6 [shape = 'u8[8192]{0}', space=vmem, size = 0x2000, scoped, tag = 'output window, operand 0']
    #allocation7 [shape = 's32[2]{0}', space=sflag, size = 0x8, scoped, tag = 'scoped memory for tpu_custom_call.1']
    %9 = vsyncpa [#allocation7], 0
    %s10 = scalar_lea.sflag [#allocation7], 1
    %11 = vsyncpa %s10, 0
    loop: start=0, step=1, limit=4
    $region2: #{tpu_custom_call.1} parent=1 // loop_pre_header
      _
    $region3: #{tpu_custom_call.1} parent=1 // loop_header
      %s13 = sphi 0, %s17
      %p14 = scmp.ge.s32.totalorder %s13, 4
      %s20 = sphi 0, %s39
      %s21 = sphi 0, %s35
      %s22 = sphi 0, %s31
      %s23 = sphi 0, %s20
      %s24 = sphi 0, %s21
      %s25 = sphi 0, %s22
      %s26 = sphi 0, %s23
      %s27 = sphi 0, %s24
      %s28 = sphi 0, %s25
      %s42 = sphi 0, %s44
      %s45 = sphi 0, %s42
      %s46 = sphi 0, %s45
      %s62 = sphi 0, %s46
      %s68 = sphi 0, %s70
      %s71 = sphi 0, %s68
      %s72 = sphi 0, %s71
      %s88 = sphi 0, %s72
      %s94 = sphi 0, %s96
      %s97 = sphi 0, %s94
      %s98 = sphi 0, %s97
      %s114 = sphi 0, %s98
      %s120 = sphi 0, %s122
      %s123 = sphi 0, %s120
      %s124 = sphi 0, %s123
      %s140 = sphi 0, %s124
      %s150 = sphi 0, %s152
      %s153 = sphi 0, %s150
      %s154 = sphi 0, %s153
      %s170 = sphi 0, %s154
    $region4: #{tpu_custom_call.1} parent=1 // loop_header_branch
      %16 = sbr.rel (%p14) target = $region8
    $region5: #{tpu_custom_call.1} parent=1 // loop_body
      %s18 = ssub.s32 %s13, 1
      %s19 = ssub.s32 %s13, 2
      %s29 = sadd.s32 1, %s22
      %p30 = scmp.ge.s32.totalorder %s29, 1
      %s31 = scalar_select %p30, 0, %s29
      %s32 = sadd.s32 1, %s21
      %s33 = scalar_select %p30, %s32, %s21
      %p34 = scmp.ge.s32.totalorder %s33, 2
      %s35 = scalar_select %p34, 0, %s33
      %s36 = sadd.s32 1, %s20
      %s37 = scalar_select %p34, %s36, %s20
      %p38 = scmp.ge.s32.totalorder %s37, 1
      %s39 = scalar_select %p38, 0, %s37
      %s40 = ssub.s32 %s20, %s39
      %p41 = scmp.eq.s32.totalorder %s40, 0
      %s43 = sadd.s32 %s42, 1
      %s44 = scalar_select %p41, %s42, %s43
      %p47 = pneg %p41
      %p48 = scmp.eq.s32.totalorder %s13, 1
      %p49 = por %p47, %p48
      %p50 = scmp.ne.s32.totalorder %s42, %s45
      %p51 = scmp.eq.s32.totalorder %s13, 0
      %p52 = por %p50, %p51
      %p53 = scmp.ne.s32.totalorder %s42, %s45
      %p54 = scmp.eq.s32.totalorder %s18, 1
      %p55 = por %p53, %p54
      %p56 = scmp.ne.s32.totalorder %s45, %s46
      %p57 = scmp.eq.s32.totalorder %s18, 0
      %p58 = por %p56, %p57
      %p59 = scmp.ne.s32.totalorder %s45, %s46
      %p60 = scmp.eq.s32.totalorder %s19, 1
      %p61 = por %p59, %p60
      %p63 = scmp.ne.s32.totalorder %s46, %s62
      %p64 = scmp.eq.s32.totalorder %s19, 0
      %p65 = por %p63, %p64
      %s66 = ssub.s32 %s22, %s31
      %p67 = scmp.eq.s32.totalorder %s66, 0
      %s69 = sadd.s32 %s68, 1
      %s70 = scalar_select %p67, %s68, %s69
      %p73 = pneg %p67
      %p74 = scmp.eq.s32.totalorder %s13, 1
      %p75 = por %p73, %p74
      %p76 = scmp.ne.s32.totalorder %s68, %s71
      %p77 = scmp.eq.s32.totalorder %s13, 0
      %p78 = por %p76, %p77
      %p79 = scmp.ne.s32.totalorder %s68, %s71
      %p80 = scmp.eq.s32.totalorder %s18, 1
      %p81 = por %p79, %p80
      %p82 = scmp.ne.s32.totalorder %s71, %s72
      %p83 = scmp.eq.s32.totalorder %s18, 0
      %p84 = por %p82, %p83
      %p85 = scmp.ne.s32.totalorder %s71, %s72
      %p86 = scmp.eq.s32.totalorder %s19, 1
      %p87 = por %p85, %p86
      %p89 = scmp.ne.s32.totalorder %s72, %s88
      %p90 = scmp.eq.s32.totalorder %s19, 0
      %p91 = por %p89, %p90
      %s92 = ssub.s32 %s20, %s39
      %p93 = scmp.eq.s32.totalorder %s92, 0
      %s95 = sadd.s32 %s94, 1
      %s96 = scalar_select %p93, %s94, %s95
      %p99 = pneg %p93
      %p100 = scmp.eq.s32.totalorder %s13, 1
      %p101 = por %p99, %p100
      %p102 = scmp.ne.s32.totalorder %s94, %s97
      %p103 = scmp.eq.s32.totalorder %s13, 0
      %p104 = por %p102, %p103
      %p105 = scmp.ne.s32.totalorder %s94, %s97
      %p106 = scmp.eq.s32.totalorder %s18, 1
      %p107 = por %p105, %p106
      %p108 = scmp.ne.s32.totalorder %s97, %s98
      %p109 = scmp.eq.s32.totalorder %s18, 0
      %p110 = por %p108, %p109
      %p111 = scmp.ne.s32.totalorder %s97, %s98
      %p112 = scmp.eq.s32.totalorder %s19, 1
      %p113 = por %p111, %p112
      %p115 = scmp.ne.s32.totalorder %s98, %s114
      %p116 = scmp.eq.s32.totalorder %s19, 0
      %p117 = por %p115, %p116
      %s118 = ssub.s32 %s20, %s39
      %p119 = scmp.eq.s32.totalorder %s118, 0
      %s121 = sadd.s32 %s120, 1
      %s122 = scalar_select %p119, %s120, %s121
      %p125 = pneg %p119
      %p126 = scmp.eq.s32.totalorder %s13, 1
      %p127 = por %p125, %p126
      %p128 = scmp.ne.s32.totalorder %s120, %s123
      %p129 = scmp.eq.s32.totalorder %s13, 0
      %p130 = por %p128, %p129
      %p131 = scmp.ne.s32.totalorder %s120, %s123
      %p132 = scmp.eq.s32.totalorder %s18, 1
      %p133 = por %p131, %p132
      %p134 = scmp.ne.s32.totalorder %s123, %s124
      %p135 = scmp.eq.s32.totalorder %s18, 0
      %p136 = por %p134, %p135
      %p137 = scmp.ne.s32.totalorder %s123, %s124
      %p138 = scmp.eq.s32.totalorder %s19, 1
      %p139 = por %p137, %p138
      %p141 = scmp.ne.s32.totalorder %s124, %s140
      %p142 = scmp.eq.s32.totalorder %s19, 0
      %p143 = por %p141, %p142
      %s144 = smul.u32 %s22, %s21
      %s145 = smul.u32 %s31, %s35
      %s146 = ssub.s32 %s20, %s39
      %s147 = ssub.s32 %s144, %s145
      %s148 = sor.u32 %s146, %s147
      %p149 = scmp.eq.s32.totalorder %s148, 0
      %s151 = sadd.s32 %s150, 1
      %s152 = scalar_select %p149, %s150, %s151
      %p155 = pneg %p149
      %p156 = scmp.eq.s32.totalorder %s13, 1
      %p157 = por %p155, %p156
      %p158 = scmp.ne.s32.totalorder %s150, %s153
      %p159 = scmp.eq.s32.totalorder %s13, 0
      %p160 = por %p158, %p159
      %p161 = scmp.ne.s32.totalorder %s150, %s153
      %p162 = scmp.eq.s32.totalorder %s18, 1
      %p163 = por %p161, %p162
      %p164 = scmp.ne.s32.totalorder %s153, %s154
      %p165 = scmp.eq.s32.totalorder %s18, 0
      %p166 = por %p164, %p165
      %p167 = scmp.ne.s32.totalorder %s153, %s154
      %p168 = scmp.eq.s32.totalorder %s19, 1
      %p169 = por %p167, %p168
      %p171 = scmp.ne.s32.totalorder %s154, %s170
      %p172 = scmp.eq.s32.totalorder %s19, 0
      %p173 = por %p171, %p172
      %p174 = scmp.le.s32.totalorder 1, %s13
      %p175 = scmp.lt.s32.totalorder %s13, 3
      %p176 = pnand %p174, %p175
      %p177 = pneg %p176
      // Predicated region
      $region9: #{tpu_custom_call.1} parent=5 // pred_check
        _
      $region10: #{tpu_custom_call.1} parent=5 // pred_check_branch
        %179 = sbr.rel (%p176) target = $region12
      $region11: #{tpu_custom_call.1} parent=5 // pred_region
        %s180 = ssub.s32 %s13, 1
        // Predicated region
        $region13: #{tpu_custom_call.1} parent=11 // pred_check
          %p181 = pneg %p58
        $region14: #{tpu_custom_call.1} parent=11 // pred_check_branch
          %183 = sbr.rel (%p181) target = $region16
        $region15: #{tpu_custom_call.1} parent=11 // pred_region
          %p184 = scmp.lt.s32.totalorder %s23, 0
          %s185 = scalar_select %p184, %s23, 0
          %s186 = smul.addr %s185, 4
          %s187 = scalar_lea.vmem %s0, %s186
        $region16: #{tpu_custom_call.1} parent=11 // pred_fallthru
          _
        // Predicated region
        $region17: #{tpu_custom_call.1} parent=11 // pred_check
          %p188 = pneg %p84
        $region18: #{tpu_custom_call.1} parent=11 // pred_check_branch
          %190 = sbr.rel (%p188) target = $region20
        $region19: #{tpu_custom_call.1} parent=11 // pred_region
          %p191 = scmp.lt.s32.totalorder %s25, 0
          %s192 = scalar_select %p191, %s25, 0
          %s193 = smul.addr %s192, 4
          %s194 = scalar_lea.vmem %s1, %s193
        $region20: #{tpu_custom_call.1} parent=11 // pred_fallthru
          _
        // Predicated region
        $region21: #{tpu_custom_call.1} parent=11 // pred_check
          %p195 = pneg %p110
        $region22: #{tpu_custom_call.1} parent=11 // pred_check_branch
          %197 = sbr.rel (%p195) target = $region24
        $region23: #{tpu_custom_call.1} parent=11 // pred_region
          %p198 = scmp.lt.s32.totalorder %s23, 0
          %s199 = scalar_select %p198, %s23, 0
          %s200 = smul.addr %s199, 8
          %s201 = scalar_lea.vmem %s2, %s200
        $region24: #{tpu_custom_call.1} parent=11 // pred_fallthru
          _
        // Predicated region
        $region25: #{tpu_custom_call.1} parent=11 // pred_check
          %p202 = pneg %p136
        $region26: #{tpu_custom_call.1} parent=11 // pred_check_branch
          %204 = sbr.rel (%p202) target = $region28
        $region27: #{tpu_custom_call.1} parent=11 // pred_region
          %p205 = scmp.lt.s32.totalorder %s23, 0
          %s206 = scalar_select %p205, %s23, 0
          %s207 = smul.addr %s206, 8
          %s208 = scalar_lea.vmem %s3, %s207
        $region28: #{tpu_custom_call.1} parent=11 // pred_fallthru
          _
      $region12: #{tpu_custom_call.1} parent=5 // pred_fallthru
        _
      %p209 = scmp.lt.s32.totalorder %s13, 2
      // Predicated region
      $region29: #{tpu_custom_call.1} parent=5 // pred_check
        %p210 = pneg %p209
      $region30: #{tpu_custom_call.1} parent=5 // pred_check_branch
        %212 = sbr.rel (%p210) target = $region32
      $region31: #{tpu_custom_call.1} parent=5 // pred_region
        _
      $region32: #{tpu_custom_call.1} parent=5 // pred_fallthru
        _
      %p213 = scmp.le.s32.totalorder 1, %s13
      %p214 = scmp.lt.s32.totalorder %s13, 3
      %p215 = pnand %p213, %p214
      %p216 = pneg %p215
      // Predicated region
      $region33: #{tpu_custom_call.1} parent=5 // pred_check
        _
      $region34: #{tpu_custom_call.1} parent=5 // pred_check_branch
        %218 = sbr.rel (%p215) target = $region36
      $region35: #{tpu_custom_call.1} parent=5 // pred_region
        %s219 = ssub.s32 %s13, 1
        %p220 = scmp.lt.s32.totalorder %s23, 0
        %s221 = scalar_select %p220, %s23, 0
        %s222 = smul.addr %s221, 4
        %s223 = scalar_lea.vmem %s0, %s222
        %p224 = pneg %p58
        %p225 = pneg %p55
        %p226 = scmp.lt.s32.totalorder %s25, 0
        %s227 = scalar_select %p226, %s25, 0
        %s228 = smul.addr %s227, 4
        %s229 = scalar_lea.vmem %s1, %s228
        %p230 = pneg %p84
        %p231 = pneg %p81
        %p232 = scmp.lt.s32.totalorder %s23, 0
        %s233 = scalar_select %p232, %s23, 0
        %s234 = smul.addr %s233, 8
        %s235 = scalar_lea.vmem %s2, %s234
        %p236 = pneg %p110
        %p237 = pneg %p107
        %p238 = scmp.lt.s32.totalorder %s23, 0
        %s239 = scalar_select %p238, %s23, 0
        %s240 = smul.addr %s239, 8
        %s241 = scalar_lea.vmem %s3, %s240
        %p242 = pneg %p136
        %p243 = pneg %p133
        %p244 = pneg %p166
        %p245 = pneg %p163
        %s246 = sand.u32 %s153, 1
        %s247 = scalar_lea.sflag [#allocation7], %s246
        %s248 = sand.u32 %s153, 1
        %s249 = smul.addr %s248, 8
        %s250 = scalar_lea.vmem [#allocation6], %s249
        %p251 = scmp.lt.s32.totalorder %s23, 0
        %s252 = scalar_select %p251, %s23, 0
        %s253 = smul.addr %s252, 4
        %s254 = scalar_lea.vmem %s0, %s253
        %p255 = scmp.lt.s32.totalorder %s25, 0
        %s256 = scalar_select %p255, %s25, 0
        %s257 = smul.addr %s256, 4
        %s258 = scalar_lea.vmem %s1, %s257
        %p259 = scmp.lt.s32.totalorder %s23, 0
        %s260 = scalar_select %p259, %s23, 0
        %s261 = smul.addr %s260, 8
        %s262 = scalar_lea.vmem %s2, %s261
        %p263 = scmp.lt.s32.totalorder %s23, 0
        %s264 = scalar_select %p263, %s23, 0
        %s265 = smul.addr %s264, 8
        %s266 = scalar_lea.vmem %s3, %s265
        %s267 = smul.u32 %s25, %s24
        %p269 = scmp.eq.s32.totalorder %s24, 0
        %p270 = scmp.eq.s32.totalorder %s25, 0
        %p271 = pnand %p269, %p270
        %p272 = pneg %p271
        // Predicated region
        $region37: #{tpu_custom_call.1} parent=35 // pred_check
          _
        $region38: #{tpu_custom_call.1} parent=35 // pred_check_branch
          %274 = sbr.rel (%p271) target = $region40
        $region39: #{tpu_custom_call.1} parent=35 // pred_region
          %vm275 = vcmask 7168
          %276 = vst.msk [vmem:[#allocation2] sm:$0xff] %vm275, 0.0
          %277 = vst.msk [vmem:[#allocation3] sm:$0xff] %vm275, 0.0
        $region40: #{tpu_custom_call.1} parent=35 // pred_fallthru
          _
        %v278 = vld [vmem:[%s254] sm:$0xf]
        %v279 = vld [vmem:[%s258] sm:$0xf]
        %v280 = vld [vmem:[%s258 + $0x4] sm:$0x3]
        %v283 = vunpack.c.l.b16 %v279
        %v284 = vunpack.c.l.b16 %v280
        %v285 = vpack.c.b16 %v284, %v283
        %vm286 = vcmask 97280
        %v288 = vsel %vm286, %v278, 0
        %vm290 = vcmask 1045504
        %v292 = vsel %vm290, %v285, 0
        %294 = vmatprep.subr.bf16.mxu0 0
        %295 = vmatpush1.bf16.msra.mxu0 %v292
        %296 = vmatprep.subr.bf16.mxu0 0
        %297 = vmatpush1.bf16.msra.mxu0 0
        %298 = vmatprep.subr.bf16.mxu0 0
        %299 = vmatpush1.bf16.msra.mxu0 0
        %300 = vmatprep.subr.bf16.mxu0 0
        %301 = vmatpush1.bf16.msra.mxu0 0
        %302 = vmatprep.subr.bf16.mxu0 0
        %303 = vmatpush1.bf16.msra.mxu0 0
        %304 = vmatprep.subr.bf16.mxu0 0
        %305 = vmatpush1.bf16.msra.mxu0 0
        %306 = vmatprep.subr.bf16.mxu0 0
        %307 = vmatpush1.bf16.msra.mxu0 0
        %308 = vmatprep.subr.bf16.mxu0 0
        %309 = vmatpush1.bf16.msra.mxu0 0
        %310 = vmatprep.subr.bf16.mxu0 0
        %311 = vmatpush1.bf16.msra.mxu0 0
        %312 = vmatprep.subr.bf16.mxu0 0
        %313 = vmatpush1.bf16.msra.mxu0 0
        %314 = vmatprep.subr.bf16.mxu0 0
        %315 = vmatpush1.bf16.msra.mxu0 0
        %316 = vmatprep.subr.bf16.mxu0 0
        %317 = vmatpush1.bf16.msra.mxu0 0
        %318 = vmatprep.subr.bf16.mxu0 0
        %319 = vmatpush1.bf16.msra.mxu0 0
        %320 = vmatprep.subr.bf16.mxu0 0
        %321 = vmatpush1.bf16.msra.mxu0 0
        %322 = vmatprep.subr.bf16.mxu0 0
        %323 = vmatpush1.bf16.msra.mxu0 0
        %324 = vmatprep.subr.bf16.mxu0 0
        %325 = vmatpush1.bf16.msra.mxu0 0
        %326 = vmatprep.mubr.bf16.mxu0 0
        %327 = vmatmul.mubr.bf16.gmra.mrb[0].mxu0 %v288
        %v328 = vpop.f32.mrb[0].mxu0
        %v329 = vadd.f32 0.0, %v328
        %v330 = vpop.f32.mrb[0].mxu0
        %v331 = vpop.f32.mrb[0].mxu0
        %v332 = vpop.f32.mrb[0].mxu0
        %333 = vdwg.mxu0
        // Predicated region
        $region41: #{tpu_custom_call.1} parent=35 // pred_check
          %p334 = pneg %p269
        $region42: #{tpu_custom_call.1} parent=35 // pred_check_branch
          %336 = sbr.rel (%p334) target = $region44
        $region43: #{tpu_custom_call.1} parent=35 // pred_region
          %v337 = vld [vmem:[#allocation2] sm:$0xff]
          %338 = vadd.xlane.f32.xlu0 %v329
          %v339 = vpop.xlane.xlu0 %338
          %v340 = vadd.f32 %v337, %v339
          %vm341 = vcmask 7168
          %342 = vst.msk [vmem:[#allocation2] sm:$0xff] %vm341, %v340
          %v343 = vld [vmem:[#allocation3] sm:$0xff]
          %v344 = vmul.f32 %v329, %v329
          %345 = vadd.xlane.f32.xlu0 %v344
          %v346 = vpop.xlane.xlu0 %345
          %v347 = vadd.f32 %v343, %v346
          %348 = vst.msk [vmem:[#allocation3] sm:$0xff] %vm341, %v347
        $region44: #{tpu_custom_call.1} parent=35 // pred_fallthru
          _
        %p349 = scmp.eq.s32.totalorder %s24, 1
        %p350 = pnand %p349, %p270
        %p351 = pneg %p350
        // Predicated region
        $region45: #{tpu_custom_call.1} parent=35 // pred_check
          _
        $region46: #{tpu_custom_call.1} parent=35 // pred_check_branch
          %353 = sbr.rel (%p350) target = $region48
        $region47: #{tpu_custom_call.1} parent=35 // pred_region
          %v354 = vld [vmem:[#allocation2] sm:$0xff]
          %v355 = vmul.f32 %v354, 0.035714287
          %v356 = vld [vmem:[#allocation3] sm:$0xff]
          %v357 = vmul.f32 %v356, 0.035714287
          %v358 = vmul.f32 %v355, %v355
          %v359 = vsub.f32 %v357, %v358
          %v360 = vmax.f32 %v359, 0.0
          %v361 = vld [vmem:[%s262] sm:$0xff]
          %v362 = vadd.f32 %v360, 1e-05
          %v363 = vrsqrt.pop %v362
          %v364 = vmul.f32 %v361, %v363
          %vm365 = vcmask 7168
          %366 = vst.msk [vmem:[#allocation4] sm:$0xff] %vm365, %v364
          %v367 = vld [vmem:[%s266] sm:$0xff]
          %v368 = vmul.f32 %v355, %v364
          %v369 = vsub.f32 %v367, %v368
          %370 = vst.msk [vmem:[#allocation5] sm:$0xff] %vm365, %v369
        $region48: #{tpu_custom_call.1} parent=35 // pred_fallthru
          _
        // Predicated region
        $region49: #{tpu_custom_call.1} parent=35 // pred_check
          %p371 = pneg %p349
        $region50: #{tpu_custom_call.1} parent=35 // pred_check_branch
          %373 = sbr.rel (%p371) target = $region52
        $region51: #{tpu_custom_call.1} parent=35 // pred_region
          %v374 = vld [vmem:[#allocation4] sm:$0xff]
          %376 = vset.pattern.permute.xlu0 0
          %377 = vperm.xlu0 %376, %v374
          %v378 = vpop.permute.xlu0 %377
          %v380 = vmul.f32 %v329, %v378
          %v381 = vld [vmem:[#allocation5] sm:$0xff]
          %383 = vset.pattern.permute.xlu0 0
          %384 = vperm.xlu0 %383, %v381
          %v385 = vpop.permute.xlu0 %384
          %v387 = vadd.f32 %v380, %v385
          %v388 = vmax.f32 %v387, 0.0
          %389 = vst [vmem:[%s250] sm:$0xff] %v388
        $region52: #{tpu_custom_call.1} parent=35 // pred_fallthru
          _
        %s390 = sand.u32 %s153, 1
        %s391 = scalar_lea.sflag [#allocation7], %s390
        %s392 = sand.u32 %s153, 1
        %s393 = smul.addr %s392, 8
        %s394 = scalar_lea.vmem [#allocation6], %s393
        // Predicated region
        $region53: #{tpu_custom_call.1} parent=35 // pred_check
          %p395 = pneg %p163
        $region54: #{tpu_custom_call.1} parent=35 // pred_check_branch
          %397 = sbr.rel (%p395) target = $region56
        $region55: #{tpu_custom_call.1} parent=35 // pred_region
          %s398 = smul.u32 %s25, %s24
          %s400 = ssub.s32 128, 128
          %401 = vsyncadd %s391, %s400
          %s402 = sadd.s32 %s398, %s23
          %s403 = smul.addr %s402, 128
          %s404 = scalar_lea.hbm %s4, %s403
          %s406 = sshll.u32 %s394, 4
          %s407 = int_to_ptr.vmem [resolvable:$true] %s406
          %409 = dma.vmem_to_hbm [thread:$0]  %s407, 128, %s404, %s391
        $region56: #{tpu_custom_call.1} parent=35 // pred_fallthru
          _
      $region36: #{tpu_custom_call.1} parent=5 // pred_fallthru
        _
      %p410 = scmp.le.s32.totalorder 2, %s13
      // Predicated region
      $region57: #{tpu_custom_call.1} parent=5 // pred_check
        %p411 = pneg %p410
      $region58: #{tpu_custom_call.1} parent=5 // pred_check_branch
        %413 = sbr.rel (%p411) target = $region60
      $region59: #{tpu_custom_call.1} parent=5 // pred_region
        %s414 = ssub.s32 %s13, 2
        // Predicated region
        $region61: #{tpu_custom_call.1} parent=59 // pred_check
          %p415 = pneg %p169
        $region62: #{tpu_custom_call.1} parent=59 // pred_check_branch
          %417 = sbr.rel (%p415) target = $region64
        $region63: #{tpu_custom_call.1} parent=59 // pred_region
          %s418 = sand.u32 %s154, 1
          %s419 = scalar_lea.sflag [#allocation7], %s418
          %s420 = sand.u32 %s154, 1
          %s421 = smul.addr %s420, 8
          %s422 = scalar_lea.vmem [#allocation6], %s421
          %423 = dma.done %s419, 128
        $region64: #{tpu_custom_call.1} parent=59 // pred_fallthru
          _
      $region60: #{tpu_custom_call.1} parent=5 // pred_fallthru
        _
    $region6: #{tpu_custom_call.1} parent=1 // loop_footer
      %s17 = sadd.s32 1, %s13
    $region7: #{tpu_custom_call.1} parent=1 // loop_footer_branch
      %12 = sbr.rel target = $region3
    $region8: #{tpu_custom_call.1} parent=1 // loop_exit
      _
    %424 = vsyncpa [#allocation7], 1
    %s425 = scalar_lea.sflag [#allocation7], 1
    %426 = vsyncpa %s425, 1

</llo_original>
